<compile_context>
chip_gen: v6e
topology: v6e:2x2x1
jax: 0.10.0
libtpu: 0.0.40
codegen_flags: <defaults>
</compile_context>

<pallas_src>
import functools

import jax
import jax.numpy as jnp
from jax.experimental import pallas as pl
from jax.experimental.pallas import tpu as pltpu


def _round_up(x, m):
    return (x + m - 1) // m * m


def _pick_compute_dtype(scores_dtype):
    """bf16-native select/sum on v6e/v7x (bf16 VALU); f32 elsewhere."""
    scores_dtype = jnp.dtype(scores_dtype)
    if scores_dtype.itemsize >= 4:
        return jnp.float32
    kind = ""
    try:
        kind = jax.devices()[0].device_kind.lower()
    except Exception:
        pass
    if ("v6" in kind) or ("v7" in kind):
        return scores_dtype          # exact: one-hot leaves <=1 nonzero per row
    return jnp.float32               # v5e and older: no bf16 VALU


def _copy_gen_probs_kernel(target_ref, align_ref, scores_ref, probs_ref,
                           vocab_acc, copy_acc, *,
                           vocab_size, force_copy, unk_index, eps, tile_v,
                           compute_dtype):
    j = pl.program_id(1)

    @pl.when(j == 0)
    def _init():
        vocab_acc[...] = jnp.zeros_like(vocab_acc)
        copy_acc[...] = jnp.zeros_like(copy_acc)

    tgt = target_ref[...]                            # (TILE_N, 1) int32
    aln = align_ref[...]                             # (TILE_N, 1) int32

    col0 = j * tile_v                                # global column offset
    col = jax.lax.broadcasted_iota(jnp.int32, (1, tile_v), 1) + col0

    # vocab_probs = scores.gather(1, target): target indices live in
    # [0, vocab_size), so skip tiles entirely past that range.
    @pl.when(col0 < vocab_size)
    def _vocab_gather():
        s = scores_ref[...].astype(compute_dtype)    # no-op when storage==compute
        hit = jnp.where(col == tgt, s, jnp.zeros_like(s))
        vocab_acc[...] += jnp.sum(hit, axis=1, keepdims=True).astype(jnp.float32)

    # copy_tok_probs = scores.gather(1, align + vocab_size): copy indices live
    # in [vocab_size, Vtot), so skip tiles entirely below that range.
    @pl.when(col0 + tile_v > vocab_size)
    def _copy_gather():
        s = scores_ref[...].astype(compute_dtype)
        hit = jnp.where(col == aln + vocab_size, s, jnp.zeros_like(s))
        copy_acc[...] += jnp.sum(hit, axis=1, keepdims=True).astype(jnp.float32)

    @pl.when(j == pl.num_programs(1) - 1)
    def _finalize():
        vocab_probs = vocab_acc[...]
        is_unk_align = aln == unk_index
        # copy_tok_probs[align == unk] = 0 ; copy_tok_probs += eps   (all f32)
        copy_tok_probs = jnp.where(is_unk_align, 0.0, copy_acc[...]) + eps
        non_copy = is_unk_align
        if not force_copy:
            non_copy = non_copy | (tgt != unk_index)
        probs_ref[...] = jnp.where(non_copy, copy_tok_probs + vocab_probs,
                                   copy_tok_probs)


def copy_generator_loss(scores, align, target, *, vocab_size, force_copy,
                        unk_index=0, ignore_index=-100, eps=1e-20,
                        tile_n=512, tile_v=4096, scores_buffers=None,
                        compute_dtype=None):
    """scores: (N, Vtot) f32/bf16; align, target: (N,) int.  Returns (N,) f32."""
    n, vtot = scores.shape
    itemsize = jnp.dtype(scores.dtype).itemsize
    if compute_dtype is None:
        compute_dtype = _pick_compute_dtype(scores.dtype)
    comp_itemsize = jnp.dtype(compute_dtype).itemsize

    # Keep blocks (sublane, 128)-aligned; bf16 packs 16 rows per sublane tile.
    sub = 16 if itemsize == 2 else 8
    tile_n = max(sub, _round_up(min(tile_n, n), sub))
    tile_v = max(128, _round_up(min(tile_v, vtot), 128))

    # Give the "parallel" row axis >=2 tiles when possible so v7x's two
    # TensorCores both get work (harmless on single-TC v5e/v6e).
    while (pl.cdiv(n, tile_n) < 2 and tile_n // 2 >= sub
           and (tile_n // 2) % sub == 0):
        tile_n //= 2

    grid = (pl.cdiv(n, tile_n), pl.cdiv(vtot, tile_v))

    # scores is NOT padded (no extra full HBM pass).  Only the tiny N-length
    # index vectors are padded so edge row blocks read deterministic indices.
    n_pad = grid[0] * tile_n
    tgt2d = jnp.pad(target.astype(jnp.int32), (0, n_pad - n)).reshape(n_pad, 1)
    aln2d = jnp.pad(align.astype(jnp.int32), (0, n_pad - n)).reshape(n_pad, 1)

    kernel = functools.partial(
        _copy_gen_probs_kernel,
        vocab_size=vocab_size, force_copy=force_copy, unk_index=unk_index,
        eps=eps, tile_v=tile_v, compute_dtype=compute_dtype)

    scores_spec_kwargs = {}
    if scores_buffers is not None and scores_buffers != 2:
        # Optional deeper pipelining on the single streamed input (sweep on v7x).
        scores_spec_kwargs["pipeline_mode"] = pl.Buffered(scores_buffers)
    scores_spec = pl.BlockSpec((tile_n, tile_v), lambda i, j: (i, j),
                               **scores_spec_kwargs)

    # VMEM budget: double-buffered scores blocks + in-kernel one-hot temps in
    # the compute dtype + the tiny per-row blocks/accumulators + headroom.
    vmem_needed = (2 * tile_n * tile_v * itemsize          # scores (double buf)
                   + 2 * tile_n * tile_v * comp_itemsize   # select temporaries
                   + 4 * tile_n * 4                        # target/align blocks
                   + 2 * tile_n * 4                        # output block
                   + 2 * tile_n * 4                        # f32 accumulators
                   + (1 << 20))                            # headroom
    vmem_limit = int(min(max(vmem_needed, 8 << 20), 48 << 20))

    probs = pl.pallas_call(
        kernel,
        out_shape=jax.ShapeDtypeStruct((n, 1), jnp.float32),
        grid_spec=pltpu.PrefetchScalarGridSpec(
            num_scalar_prefetch=0,
            grid=grid,
            in_specs=[
                pl.BlockSpec((tile_n, 1), lambda i, j: (i, 0)),   # target
                pl.BlockSpec((tile_n, 1), lambda i, j: (i, 0)),   # align
                scores_spec,                                      # scores
            ],
            out_specs=pl.BlockSpec((tile_n, 1), lambda i, j: (i, 0)),
            scratch_shapes=[pltpu.VMEM((tile_n, 1), jnp.float32),   # vocab acc
                            pltpu.VMEM((tile_n, 1), jnp.float32)],  # copy acc
        ),
        compiler_params=pltpu.CompilerParams(
            dimension_semantics=("parallel", "arbitrary"),
            vmem_limit_bytes=vmem_limit),
        cost_estimate=pl.CostEstimate(
            flops=int(2 * n * vtot),
            transcendentals=0,
            bytes_accessed=int(n * vtot * itemsize + 3 * n * 4)),
    )(tgt2d, aln2d, scores)

    # ---- tiny O(N) finalize in plain JAX (exact PyTorch semantics) ----
    # Slice to valid rows BEFORE the global log-sum so garbage edge rows can
    # never trigger the NaN-rescue branch (there are none: out_shape is (n,1)).
    probs = probs[:, 0]
    target = target.astype(jnp.int32)
    logp = jnp.log(probs)
    # host-side `math.isnan(probs.log().sum())` rescue: global across all rows,
    # so it lives in the wrapper (kernel is tiled over N).
    rescue = jnp.isnan(jnp.sum(logp))
    loss = jnp.where(rescue, -jnp.log(probs - jnp.min(probs) + eps), -logp)
    # TODO(synk): targets equal to ignore_index (e.g. torch's -100) produce a
    # zero gather instead of a torch.gather error; the loss is masked to 0
    # below, matching OpenNMT usage.
    loss = jnp.where(target == ignore_index, 0.0, loss)
    return loss


def _reference(scores, align, target, *, vocab_size, force_copy,
               unk_index=0, ignore_index=-100, eps=1e-20):
    """Pure-JAX reference mirroring the PyTorch forward."""
    scores = scores.astype(jnp.float32)
    n = scores.shape[0]
    rows = jnp.arange(n)
    vocab_probs = scores[rows, target]
    copy_tok_probs = scores[rows, align + vocab_size]
    copy_tok_probs = jnp.where(align == unk_index, 0.0, copy_tok_probs) + eps
    non_copy = align == unk_index
    if not force_copy:
        non_copy = non_copy | (target != unk_index)
    probs = jnp.where(non_copy, copy_tok_probs + vocab_probs, copy_tok_probs)
    logp = jnp.log(probs)
    probs = jnp.where(jnp.isnan(jnp.sum(logp)),
                      probs - jnp.min(probs) + eps, probs)
    loss = -jnp.log(probs)
    return jnp.where(target == ignore_index, 0.0, loss)


if __name__ == "__main__":
    # Small synthetic shapes chosen to exercise the new unpadded edge-block
    # path: N=28 rows (not a multiple of tile_n=16) and Vtot=226 lanes (not a
    # multiple of tile_v=128), giving a (2, 2) grid with partial blocks on
    # both axes plus the row-parallel and vocab-reduction machinery.
    batch, tgt_len = 4, 7
    vocab_size, copy_vocab = 96, 130
    vtot = vocab_size + copy_vocab
    n = batch * tgt_len
    force_copy = False
    unk_index = 0
    ignore_index = 1          # valid pad-token index, like OpenNMT uses
    eps = 1e-20

    key = jax.random.PRNGKey(0)
    k1, k2, k3 = jax.random.split(key, 3)

    # "cols softmaxed" scores, stored in bf16 (kernel accumulates in f32).
    logits = jax.random.normal(k1, (n, vtot), dtype=jnp.float32)
    scores = jax.nn.softmax(logits, axis=-1).astype(jnp.bfloat16)

    target = jax.random.randint(k2, (n,), 0, vocab_size, dtype=jnp.int32)
    align = jax.random.randint(k3, (n,), 0, copy_vocab, dtype=jnp.int32)
    # exercise the unk / ignore branches
    align = align.at[0].set(unk_index)
    target = target.at[1].set(unk_index)
    target = target.at[2].set(ignore_index)

    loss = copy_generator_loss(scores, align, target,
                               vocab_size=vocab_size, force_copy=force_copy,
                               unk_index=unk_index, ignore_index=ignore_index,
                               eps=eps, tile_n=16, tile_v=128)
    loss = jax.block_until_ready(loss)

    ref = _reference(scores, align, target,
                     vocab_size=vocab_size, force_copy=force_copy,
                     unk_index=unk_index, ignore_index=ignore_index, eps=eps)

    assert loss.shape == (n,)
    assert loss.dtype == jnp.float32
    assert bool(jnp.allclose(loss, ref, rtol=1e-5, atol=1e-6)), (loss, ref)
    assert bool(loss[2] == 0.0)   # ignore_index row masked to zero

    print("KERNEL_OK")
</pallas_src>

<mosaic_0001>
module attributes {stable_mosaic.version = 11 : i64} {
  func.func @_copy_gen_probs_kernel(%arg0: i32, %arg1: i32, %arg2: memref<16x1xi32, #tpu.memory_space<vmem>>, %arg3: memref<16x1xi32, #tpu.memory_space<vmem>>, %arg4: memref<16x128xbf16, #tpu.memory_space<vmem>>, %arg5: memref<16x1xf32, #tpu.memory_space<vmem>>, %arg6: memref<16x1xf32, #tpu.memory_space<vmem>>, %arg7: memref<16x1xf32, #tpu.memory_space<vmem>>) attributes {dimension_semantics = [#tpu.dimension_semantics<parallel>, #tpu.dimension_semantics<arbitrary>], iteration_bounds = array<i64: 2, 2>, scalar_prefetch = 0 : i64, scratch_operands = 2 : i64, tpu.core_type = #tpu.core_type<tc>, window_params = [{transform_indices = @transform_0, window_bounds = array<i64: 16, 1>}, {transform_indices = @transform_1, window_bounds = array<i64: 16, 1>}, {transform_indices = @transform_2, window_bounds = array<i64: 16, 128>}, {transform_indices = @transform_3, window_bounds = array<i64: 16, 1>}]} {
    %c0_i32 = arith.constant 0 : i32
    %0 = arith.cmpi eq, %arg1, %c0_i32 : i32
    %1 = arith.extui %0 : i1 to i32
    %c0_i32_0 = arith.constant 0 : i32
    %2 = arith.cmpi ne, %1, %c0_i32_0 : i32
    scf.if %2 {
      %cst = arith.constant 0.000000e+00 : f32
      %19 = vector.broadcast %cst : f32 to vector<16x1xf32>
      %c0_9 = arith.constant 0 : index
      %c0_10 = arith.constant 0 : index
      %20 = vector.load %arg6[%c0_9, %c0_10] : memref<16x1xf32, #tpu.memory_space<vmem>>, vector<16x1xf32>
      tpu.vector_store %arg6[%c0_9, %c0_10], %19 {strides = array<i32>} : memref<16x1xf32, #tpu.memory_space<vmem>>, vector<16x1xf32>,
      %cst_11 = arith.constant 0.000000e+00 : f32
      %21 = vector.broadcast %cst_11 : f32 to vector<16x1xf32>
      %c0_12 = arith.constant 0 : index
      %c0_13 = arith.constant 0 : index
      %22 = vector.load %arg7[%c0_12, %c0_13] : memref<16x1xf32, #tpu.memory_space<vmem>>, vector<16x1xf32>
      tpu.vector_store %arg7[%c0_12, %c0_13], %21 {strides = array<i32>} : memref<16x1xf32, #tpu.memory_space<vmem>>, vector<16x1xf32>,
    } else {
    }
    %c0 = arith.constant 0 : index
    %c0_1 = arith.constant 0 : index
    %3 = vector.load %arg2[%c0, %c0_1] : memref<16x1xi32, #tpu.memory_space<vmem>>, vector<16x1xi32>
    %c0_2 = arith.constant 0 : index
    %c0_3 = arith.constant 0 : index
    %4 = vector.load %arg3[%c0_2, %c0_3] : memref<16x1xi32, #tpu.memory_space<vmem>>, vector<16x1xi32>
    %c128_i32 = arith.constant 128 : i32
    %5 = arith.muli %arg1, %c128_i32 : i32
    %6 = tpu.iota {dimensions = array<i32: 1>} : vector<1x128xi32>
    %7 = vector.broadcast %5 : i32 to vector<1x128xi32>
    %8 = arith.addi %6, %7 : vector<1x128xi32>
    %c96_i32 = arith.constant 96 : i32
    %9 = arith.cmpi slt, %5, %c96_i32 : i32
    %10 = arith.extui %9 : i1 to i32
    %c0_i32_4 = arith.constant 0 : i32
    %11 = arith.cmpi ne, %10, %c0_i32_4 : i32
    scf.if %11 {
      %c0_9 = arith.constant 0 : index
      %c0_10 = arith.constant 0 : index
      %19 = vector.load %arg4[%c0_9, %c0_10] : memref<16x128xbf16, #tpu.memory_space<vmem>>, vector<16x128xbf16>
      %20 = arith.extf %19 : vector<16x128xbf16> to vector<16x128xf32>
      %21 = vector.broadcast %8 : vector<1x128xi32> to vector<16x128xi32>
      %22 = vector.broadcast %3 : vector<16x1xi32> to vector<16x128xi32>
      %23 = arith.cmpi eq, %21, %22 : vector<16x128xi32>
      %cst = arith.constant 0.000000e+00 : f32
      %24 = vector.broadcast %cst : f32 to vector<16x128xf32>
      %25 = arith.select %23, %20, %24 : vector<16x128xi1>, vector<16x128xf32>
      %c0_11 = arith.constant 0 : index
      %c0_12 = arith.constant 0 : index
      %26 = vector.load %arg6[%c0_11, %c0_12] : memref<16x1xf32, #tpu.memory_space<vmem>>, vector<16x1xf32>
      %cst_13 = arith.constant dense<0.000000e+00> : vector<16xf32>
      %27 = vector.multi_reduction <add>, %25, %cst_13 [1] : vector<16x128xf32> to vector<16xf32>
      %28 = vector.shape_cast %27 : vector<16xf32> to vector<16x1xf32>
      %29 = arith.addf %26, %28 : vector<16x1xf32>
      %c0_14 = arith.constant 0 : index
      %c0_15 = arith.constant 0 : index
      %30 = vector.load %arg6[%c0_14, %c0_15] : memref<16x1xf32, #tpu.memory_space<vmem>>, vector<16x1xf32>
      tpu.vector_store %arg6[%c0_14, %c0_15], %29 {strides = array<i32>} : memref<16x1xf32, #tpu.memory_space<vmem>>, vector<16x1xf32>,
    } else {
    }
    %c128_i32_5 = arith.constant 128 : i32
    %12 = arith.addi %5, %c128_i32_5 : i32
    %c96_i32_6 = arith.constant 96 : i32
    %13 = arith.cmpi sgt, %12, %c96_i32_6 : i32
    %14 = arith.extui %13 : i1 to i32
    %c0_i32_7 = arith.constant 0 : i32
    %15 = arith.cmpi ne, %14, %c0_i32_7 : i32
    scf.if %15 {
      %c0_9 = arith.constant 0 : index
      %c0_10 = arith.constant 0 : index
      %19 = vector.load %arg4[%c0_9, %c0_10] : memref<16x128xbf16, #tpu.memory_space<vmem>>, vector<16x128xbf16>
      %20 = arith.extf %19 : vector<16x128xbf16> to vector<16x128xf32>
      %c96_i32_11 = arith.constant 96 : i32
      %21 = vector.broadcast %c96_i32_11 : i32 to vector<16x1xi32>
      %22 = arith.addi %4, %21 : vector<16x1xi32>
      %23 = vector.broadcast %8 : vector<1x128xi32> to vector<16x128xi32>
      %24 = vector.broadcast %22 : vector<16x1xi32> to vector<16x128xi32>
      %25 = arith.cmpi eq, %23, %24 : vector<16x128xi32>
      %cst = arith.constant 0.000000e+00 : f32
      %26 = vector.broadcast %cst : f32 to vector<16x128xf32>
      %27 = arith.select %25, %20, %26 : vector<16x128xi1>, vector<16x128xf32>
      %c0_12 = arith.constant 0 : index
      %c0_13 = arith.constant 0 : index
      %28 = vector.load %arg7[%c0_12, %c0_13] : memref<16x1xf32, #tpu.memory_space<vmem>>, vector<16x1xf32>
      %cst_14 = arith.constant dense<0.000000e+00> : vector<16xf32>
      %29 = vector.multi_reduction <add>, %27, %cst_14 [1] : vector<16x128xf32> to vector<16xf32>
      %30 = vector.shape_cast %29 : vector<16xf32> to vector<16x1xf32>
      %31 = arith.addf %28, %30 : vector<16x1xf32>
      %c0_15 = arith.constant 0 : index
      %c0_16 = arith.constant 0 : index
      %32 = vector.load %arg7[%c0_15, %c0_16] : memref<16x1xf32, #tpu.memory_space<vmem>>, vector<16x1xf32>
      tpu.vector_store %arg7[%c0_15, %c0_16], %31 {strides = array<i32>} : memref<16x1xf32, #tpu.memory_space<vmem>>, vector<16x1xf32>,
    } else {
    }
    %c1_i32 = arith.constant 1 : i32
    %16 = arith.cmpi eq, %arg1, %c1_i32 : i32
    %17 = arith.extui %16 : i1 to i32
    %c0_i32_8 = arith.constant 0 : i32
    %18 = arith.cmpi ne, %17, %c0_i32_8 : i32
    scf.if %18 {
      %c0_9 = arith.constant 0 : index
      %c0_10 = arith.constant 0 : index
      %19 = vector.load %arg6[%c0_9, %c0_10] : memref<16x1xf32, #tpu.memory_space<vmem>>, vector<16x1xf32>
      %c0_i32_11 = arith.constant 0 : i32
      %20 = vector.broadcast %c0_i32_11 : i32 to vector<16x1xi32>
      %21 = arith.cmpi eq, %4, %20 : vector<16x1xi32>
      %c0_12 = arith.constant 0 : index
      %c0_13 = arith.constant 0 : index
      %22 = vector.load %arg7[%c0_12, %c0_13] : memref<16x1xf32, #tpu.memory_space<vmem>>, vector<16x1xf32>
      %cst = arith.constant 0.000000e+00 : f32
      %23 = vector.broadcast %cst : f32 to vector<16x1xf32>
      %24 = arith.select %21, %23, %22 : vector<16x1xi1>, vector<16x1xf32>
      %cst_14 = arith.constant 9.99999968E-21 : f32
      %25 = vector.broadcast %cst_14 : f32 to vector<16x1xf32>
      %26 = arith.addf %24, %25 : vector<16x1xf32>
      %c0_i32_15 = arith.constant 0 : i32
      %27 = vector.broadcast %c0_i32_15 : i32 to vector<16x1xi32>
      %28 = arith.cmpi ne, %3, %27 : vector<16x1xi32>
      %29 = arith.ori %21, %28 : vector<16x1xi1>
      %30 = arith.addf %26, %19 : vector<16x1xf32>
      %31 = arith.select %29, %30, %26 : vector<16x1xi1>, vector<16x1xf32>
      %c0_16 = arith.constant 0 : index
      %c0_17 = arith.constant 0 : index
      %32 = vector.load %arg5[%c0_16, %c0_17] : memref<16x1xf32, #tpu.memory_space<vmem>>, vector<16x1xf32>
      tpu.vector_store %arg5[%c0_16, %c0_17], %31 {strides = array<i32>} : memref<16x1xf32, #tpu.memory_space<vmem>>, vector<16x1xf32>,
    } else {
    }
    return
  }
  func.func @transform_0(%arg0: i32, %arg1: i32) -> (i32, i32) {
    %c0_i32 = arith.constant 0 : i32
    %c0_i32_0 = arith.constant 0 : i32
    return %arg0, %c0_i32 : i32, i32
  }
  func.func @transform_1(%arg0: i32, %arg1: i32) -> (i32, i32) {
    %c0_i32 = arith.constant 0 : i32
    %c0_i32_0 = arith.constant 0 : i32
    return %arg0, %c0_i32 : i32, i32
  }
  func.func @transform_2(%arg0: i32, %arg1: i32) -> (i32, i32) {
    %c0_i32 = arith.constant 0 : i32
    return %arg0, %arg1 : i32, i32
  }
  func.func @transform_3(%arg0: i32, %arg1: i32) -> (i32, i32) {
    %c0_i32 = arith.constant 0 : i32
    %c0_i32_0 = arith.constant 0 : i32
    return %arg0, %c0_i32 : i32, i32
  }
}

</mosaic_0001>

<llo_original>
// kernel: tpu_custom_call.1
$region0: #{tpu_custom_call.1}
  #allocation0 [shape = 'u32[]', space=smem, size = 0x4, offset = 0x4, fixed_abs, tag = 'smem constant byte address 0x4 - core index']
  #allocation1 [shape = 'u32[144,128]{1,0:T(1,128)}', space=vmem, size = 0x12000, scoped, tag = 'internal scratch']
  #allocation2 [shape = 'f32[16,1]{1,0:T(8,128)}', space=vmem, size = 0x2000, scoped, tag = 'scratch operand']
  #allocation3 [shape = 'f32[16,1]{1,0:T(8,128)}', space=vmem, size = 0x2000, scoped, tag = 'scratch operand']
  %s0 = inlined_call_operand.vmem [shape: s32[32,1], index: 0, kind: input, shape index: {}]
  %s1 = inlined_call_operand.vmem [shape: s32[32,1], index: 1, kind: input, shape index: {}]
  %s2 = inlined_call_operand.vmem [shape: bf16[28,226], index: 2, kind: input, shape index: {}]
  %s3 = inlined_call_operand.vmem [shape: f32[28,1], index: 3, kind: output, shape index: {}]
  %s4 = sld [smem:[#allocation0]]
  $region102: #{tpu_custom_call.1} parent=0
    _
  %s6 = ssub.s32 1, %s4
  %s7 = scalar_select 0, %s6, %s4
  $region1: #{tpu_custom_call.1} parent=0
    #allocation4 [shape = 'u8[8192]{0}', space=vmem, size = 0x2000, scoped, tag = 'input window, operand 2']
    loop: start=0, step=1, limit=6
    $region2: #{tpu_custom_call.1} parent=1 // loop_pre_header
      _
    $region3: #{tpu_custom_call.1} parent=1 // loop_header
      %s9 = sphi 0, %s13
      %p10 = scmp.ge.s32.totalorder %s9, 6
      %s16 = sphi 0, %s28
      %s17 = sphi 0, %s24
      %s18 = sphi 0, %s16
      %s19 = sphi 0, %s17
      %s20 = sphi 0, %s18
      %s21 = sphi 0, %s19
      %s31 = sphi 0, %s33
      %s34 = sphi 0, %s31
      %s35 = sphi 0, %s34
      %s51 = sphi 0, %s35
      %s57 = sphi 0, %s59
      %s60 = sphi 0, %s57
      %s61 = sphi 0, %s60
      %s77 = sphi 0, %s61
      %s85 = sphi 0, %s87
      %s88 = sphi 0, %s85
      %s89 = sphi 0, %s88
      %s105 = sphi 0, %s89
      %s111 = sphi 0, %s113
      %s114 = sphi 0, %s111
      %s115 = sphi 0, %s114
      %s131 = sphi 0, %s115
    $region4: #{tpu_custom_call.1} parent=1 // loop_header_branch
      %12 = sbr.rel (%p10) target = $region8
    $region5: #{tpu_custom_call.1} parent=1 // loop_body
      %s14 = ssub.s32 %s9, 1
      %s15 = ssub.s32 %s9, 2
      %s22 = sadd.s32 1, %s17
      %p23 = scmp.ge.s32.totalorder %s22, 2
      %s24 = scalar_select %p23, 0, %s22
      %s25 = sadd.s32 1, %s16
      %s26 = scalar_select %p23, %s25, %s16
      %p27 = scmp.ge.s32.totalorder %s26, 2
      %s28 = scalar_select %p27, 0, %s26
      %s29 = ssub.s32 %s16, %s28
      %p30 = scmp.eq.s32.totalorder %s29, 0
      %s32 = sadd.s32 %s31, 1
      %s33 = scalar_select %p30, %s31, %s32
      %p36 = pneg %p30
      %p37 = scmp.eq.s32.totalorder %s9, 3
      %p38 = por %p36, %p37
      %p39 = scmp.ne.s32.totalorder %s31, %s34
      %p40 = scmp.eq.s32.totalorder %s9, 0
      %p41 = por %p39, %p40
      %p42 = scmp.ne.s32.totalorder %s31, %s34
      %p43 = scmp.eq.s32.totalorder %s14, 3
      %p44 = por %p42, %p43
      %p45 = scmp.ne.s32.totalorder %s34, %s35
      %p46 = scmp.eq.s32.totalorder %s14, 0
      %p47 = por %p45, %p46
      %p48 = scmp.ne.s32.totalorder %s34, %s35
      %p49 = scmp.eq.s32.totalorder %s15, 3
      %p50 = por %p48, %p49
      %p52 = scmp.ne.s32.totalorder %s35, %s51
      %p53 = scmp.eq.s32.totalorder %s15, 0
      %p54 = por %p52, %p53
      %s55 = ssub.s32 %s16, %s28
      %p56 = scmp.eq.s32.totalorder %s55, 0
      %s58 = sadd.s32 %s57, 1
      %s59 = scalar_select %p56, %s57, %s58
      %p62 = pneg %p56
      %p63 = scmp.eq.s32.totalorder %s9, 3
      %p64 = por %p62, %p63
      %p65 = scmp.ne.s32.totalorder %s57, %s60
      %p66 = scmp.eq.s32.totalorder %s9, 0
      %p67 = por %p65, %p66
      %p68 = scmp.ne.s32.totalorder %s57, %s60
      %p69 = scmp.eq.s32.totalorder %s14, 3
      %p70 = por %p68, %p69
      %p71 = scmp.ne.s32.totalorder %s60, %s61
      %p72 = scmp.eq.s32.totalorder %s14, 0
      %p73 = por %p71, %p72
      %p74 = scmp.ne.s32.totalorder %s60, %s61
      %p75 = scmp.eq.s32.totalorder %s15, 3
      %p76 = por %p74, %p75
      %p78 = scmp.ne.s32.totalorder %s61, %s77
      %p79 = scmp.eq.s32.totalorder %s15, 0
      %p80 = por %p78, %p79
      %s81 = ssub.s32 %s16, %s28
      %s82 = ssub.s32 %s17, %s24
      %s83 = sor.u32 %s81, %s82
      %p84 = scmp.eq.s32.totalorder %s83, 0
      %s86 = sadd.s32 %s85, 1
      %s87 = scalar_select %p84, %s85, %s86
      %p90 = pneg %p84
      %p91 = scmp.eq.s32.totalorder %s9, 3
      %p92 = por %p90, %p91
      %p93 = scmp.ne.s32.totalorder %s85, %s88
      %p94 = scmp.eq.s32.totalorder %s9, 0
      %p95 = por %p93, %p94
      %p96 = scmp.ne.s32.totalorder %s85, %s88
      %p97 = scmp.eq.s32.totalorder %s14, 3
      %p98 = por %p96, %p97
      %p99 = scmp.ne.s32.totalorder %s88, %s89
      %p100 = scmp.eq.s32.totalorder %s14, 0
      %p101 = por %p99, %p100
      %p102 = scmp.ne.s32.totalorder %s88, %s89
      %p103 = scmp.eq.s32.totalorder %s15, 3
      %p104 = por %p102, %p103
      %p106 = scmp.ne.s32.totalorder %s89, %s105
      %p107 = scmp.eq.s32.totalorder %s15, 0
      %p108 = por %p106, %p107
      %s109 = ssub.s32 %s16, %s28
      %p110 = scmp.eq.s32.totalorder %s109, 0
      %s112 = sadd.s32 %s111, 1
      %s113 = scalar_select %p110, %s111, %s112
      %p116 = pneg %p110
      %p117 = scmp.eq.s32.totalorder %s9, 3
      %p118 = por %p116, %p117
      %p119 = scmp.ne.s32.totalorder %s111, %s114
      %p120 = scmp.eq.s32.totalorder %s9, 0
      %p121 = por %p119, %p120
      %p122 = scmp.ne.s32.totalorder %s111, %s114
      %p123 = scmp.eq.s32.totalorder %s14, 3
      %p124 = por %p122, %p123
      %p125 = scmp.ne.s32.totalorder %s114, %s115
      %p126 = scmp.eq.s32.totalorder %s14, 0
      %p127 = por %p125, %p126
      %p128 = scmp.ne.s32.totalorder %s114, %s115
      %p129 = scmp.eq.s32.totalorder %s15, 3
      %p130 = por %p128, %p129
      %p132 = scmp.ne.s32.totalorder %s115, %s131
      %p133 = scmp.eq.s32.totalorder %s15, 0
      %p134 = por %p132, %p133
      %p135 = scmp.le.s32.totalorder 1, %s9
      %p136 = scmp.lt.s32.totalorder %s9, 5
      %p137 = pnand %p135, %p136
      %p138 = pneg %p137
      // Predicated region
      $region9: #{tpu_custom_call.1} parent=5 // pred_check
        _
      $region10: #{tpu_custom_call.1} parent=5 // pred_check_branch
        %140 = sbr.rel (%p137) target = $region12
      $region11: #{tpu_custom_call.1} parent=5 // pred_region
        %s141 = ssub.s32 %s9, 1
      $region12: #{tpu_custom_call.1} parent=5 // pred_fallthru
        _
      %p142 = scmp.lt.s32.totalorder %s9, 4
      // Predicated region
      $region13: #{tpu_custom_call.1} parent=5 // pred_check
        %p143 = pneg %p142
      $region14: #{tpu_custom_call.1} parent=5 // pred_check_branch
        %145 = sbr.rel (%p143) target = $region16
      $region15: #{tpu_custom_call.1} parent=5 // pred_region
        // Predicated region
        $region17: #{tpu_custom_call.1} parent=15 // pred_check
          %p146 = pneg %p41
        $region18: #{tpu_custom_call.1} parent=15 // pred_check_branch
          %148 = sbr.rel (%p146) target = $region20
        $region19: #{tpu_custom_call.1} parent=15 // pred_region
          %s149 = smul.u32 2, %s16
          %p150 = scmp.lt.s32.totalorder %s149, 3
          %s151 = scalar_select %p150, %s149, 3
          %s152 = smul.addr %s151, 8
          %s153 = scalar_lea.vmem %s0, %s152
          %s154 = smul.u32 2, %s16
        $region20: #{tpu_custom_call.1} parent=15 // pred_fallthru
          _
        // Predicated region
        $region21: #{tpu_custom_call.1} parent=15 // pred_check
          %p155 = pneg %p67
        $region22: #{tpu_custom_call.1} parent=15 // pred_check_branch
          %157 = sbr.rel (%p155) target = $region24
        $region23: #{tpu_custom_call.1} parent=15 // pred_region
          %s158 = smul.u32 2, %s16
          %p159 = scmp.lt.s32.totalorder %s158, 3
          %s160 = scalar_select %p159, %s158, 3
          %s161 = smul.addr %s160, 8
          %s162 = scalar_lea.vmem %s1, %s161
          %s163 = smul.u32 2, %s16
        $region24: #{tpu_custom_call.1} parent=15 // pred_fallthru
          _
        // Predicated region
        $region25: #{tpu_custom_call.1} parent=15 // pred_check
          %p164 = pneg %p95
        $region26: #{tpu_custom_call.1} parent=15 // pred_check_branch
          %166 = sbr.rel (%p164) target = $region28
        $region27: #{tpu_custom_call.1} parent=15 // pred_region
          %s167 = sand.u32 %s85, 1
          %s168 = sand.u32 %s85, 1
          %s169 = smul.addr %s168, 8
          %s170 = scalar_lea.vmem [#allocation4], %s169
          %s171 = smul.u32 2, %s16
          %s172 = smul.addr %s171, 2
          %s173 = sadd.s32 %s17, %s172
          %s174 = smul.addr %s173, 4
          %s175 = scalar_lea.vmem %s2, %s174
          // Predicated region
          $region29: #{tpu_custom_call.1} parent=27 // pred_check
            _
          $region30: #{tpu_custom_call.1} parent=27 // pred_check_branch
            %177 = sbr.rel (0) target = $region32
          $region31: #{tpu_custom_call.1} parent=27 // pred_region
            // Predicated region
            $region33: #{tpu_custom_call.1} parent=31 // pred_check
              _
            $region34: #{tpu_custom_call.1} parent=31 // pred_check_branch
              %179 = sbr.rel target = $region36
            $region35: #{tpu_custom_call.1} parent=31 // pred_region
              // Predicated region
              $region48: #{tpu_custom_call.1} parent=35 // pred_check
                _
              $region49: #{tpu_custom_call.1} parent=35 // pred_check_branch
                %197 = sbr.rel (0) target = $region51
              $region50: #{tpu_custom_call.1} parent=35 // pred_region
                loop: start=0, step=1, limit=1
                $region52: #{tpu_custom_call.1} parent=50 // loop_pre_header
                  _
                $region53: #{tpu_custom_call.1} parent=50 // loop_header
                  %s199 = sphi 0, %s203
                  %p200 = scmp.ge.s32.totalorder %s199, 1
                  %s204 = sphi %s175, %s175
                  %s205 = sphi %s170, %s170
                $region54: #{tpu_custom_call.1} parent=50 // loop_header_branch
                  %202 = sbr.rel (%p200) target = $region58
                $region55: #{tpu_custom_call.1} parent=50 // loop_body
                  _
                $region56: #{tpu_custom_call.1} parent=50 // loop_footer
                  %s203 = sadd.s32 1, %s199
                $region57: #{tpu_custom_call.1} parent=50 // loop_footer_branch
                  %198 = sbr.rel target = $region53
                $region58: #{tpu_custom_call.1} parent=50 // loop_exit
                  _
                %s207 = ssub.s32 16, 1
                loop: start=0, step=1, limit=1
                $region59: #{tpu_custom_call.1} parent=50 // loop_pre_header
                  _
                $region60: #{tpu_custom_call.1} parent=50 // loop_header
                  %s209 = sphi 0, %s213
                  %p210 = scmp.ge.s32.totalorder %s209, 1
                  %s214 = sphi %s175, %s175
                  %s215 = sphi %s170, %s170
                $region61: #{tpu_custom_call.1} parent=50 // loop_header_branch
                  %212 = sbr.rel (%p210) target = $region65
                $region62: #{tpu_custom_call.1} parent=50 // loop_body
                  %v216 = vld [vmem:[%s214] sm:%s207]
                  %217 = vst [vmem:[%s215] sm:%s207] %v216
                  %v218 = vld [vmem:[%s214 + $0x8] sm:%s207]
                  %219 = vst [vmem:[%s215 + $0x4] sm:%s207] %v218
                $region63: #{tpu_custom_call.1} parent=50 // loop_footer
                  %s213 = sadd.s32 1, %s209
                $region64: #{tpu_custom_call.1} parent=50 // loop_footer_branch
                  %208 = sbr.rel target = $region60
                $region65: #{tpu_custom_call.1} parent=50 // loop_exit
                  _
              $region51: #{tpu_custom_call.1} parent=35 // pred_fallthru
                _
            $region36: #{tpu_custom_call.1} parent=31 // pred_fallthru
              _
            // Predicated region
            $region37: #{tpu_custom_call.1} parent=31 // pred_check
              _
            $region38: #{tpu_custom_call.1} parent=31 // pred_check_branch
              %181 = sbr.rel (0) target = $region40
            $region39: #{tpu_custom_call.1} parent=31 // pred_region
              %s183 = ssub.s32 16, 1
              loop: start=0, step=1, limit=1
              $region41: #{tpu_custom_call.1} parent=39 // loop_pre_header
                _
              $region42: #{tpu_custom_call.1} parent=39 // loop_header
                %s185 = sphi 0, %s189
                %p186 = scmp.ge.s32.totalorder %s185, 1
                %s190 = sphi %s175, %s175
                %s191 = sphi %s170, %s170
              $region43: #{tpu_custom_call.1} parent=39 // loop_header_branch
                %188 = sbr.rel (%p186) target = $region47
              $region44: #{tpu_custom_call.1} parent=39 // loop_body
                %v192 = vld [vmem:[%s190] sm:%s183]
                %193 = vst [vmem:[%s191] sm:%s183] %v192
                %v194 = vld [vmem:[%s190 + $0x8] sm:%s183]
                %195 = vst [vmem:[%s191 + $0x4] sm:%s183] %v194
              $region45: #{tpu_custom_call.1} parent=39 // loop_footer
                %s189 = sadd.s32 1, %s185
              $region46: #{tpu_custom_call.1} parent=39 // loop_footer_branch
                %184 = sbr.rel target = $region42
              $region47: #{tpu_custom_call.1} parent=39 // loop_exit
                _
            $region40: #{tpu_custom_call.1} parent=31 // pred_fallthru
              _
          $region32: #{tpu_custom_call.1} parent=27 // pred_fallthru
            _
          %220 = vnop
        $region28: #{tpu_custom_call.1} parent=15 // pred_fallthru
          _
      $region16: #{tpu_custom_call.1} parent=5 // pred_fallthru
        _
      %p221 = scmp.le.s32.totalorder 1, %s9
      %p222 = scmp.lt.s32.totalorder %s9, 5
      %p223 = pnand %p221, %p222
      %p224 = pneg %p223
      // Predicated region
      $region66: #{tpu_custom_call.1} parent=5 // pred_check
        _
      $region67: #{tpu_custom_call.1} parent=5 // pred_check_branch
        %226 = sbr.rel (%p223) target = $region69
      $region68: #{tpu_custom_call.1} parent=5 // pred_region
        %s227 = ssub.s32 %s9, 1
        %s228 = sand.u32 %s88, 1
        %s229 = sand.u32 %s88, 1
        %s230 = smul.addr %s229, 8
        %s231 = scalar_lea.vmem [#allocation4], %s230
        // Predicated region
        $region70: #{tpu_custom_call.1} parent=68 // pred_check
          %p232 = pneg %p101
        $region71: #{tpu_custom_call.1} parent=68 // pred_check_branch
          %234 = sbr.rel (%p232) target = $region73
        $region72: #{tpu_custom_call.1} parent=68 // pred_region
          _
        $region73: #{tpu_custom_call.1} parent=68 // pred_fallthru
          _
        %s235 = smul.u32 2, %s18
        %p236 = scmp.lt.s32.totalorder %s235, 3
        %s237 = scalar_select %p236, %s235, 3
        %s238 = smul.addr %s237, 8
        %s239 = scalar_lea.vmem %s0, %s238
        %p240 = pneg %p47
        %p241 = pneg %p44
        %s242 = smul.u32 2, %s18
        %p243 = scmp.lt.s32.totalorder %s242, 3
        %s244 = scalar_select %p243, %s242, 3
        %s245 = smul.addr %s244, 8
        %s246 = scalar_lea.vmem %s1, %s245
        %p247 = pneg %p73
        %p248 = pneg %p70
        %s249 = sand.u32 %s88, 1
        %s250 = sand.u32 %s88, 1
        %s251 = smul.addr %s250, 8
        %s252 = scalar_lea.vmem [#allocation4], %s251
        %p253 = pneg %p101
        %p254 = pneg %p98
        %p255 = pneg %p127
        %p256 = pneg %p124
        %s257 = smul.u32 2, %s18
        %p258 = scmp.lt.s32.totalorder %s257, 3
        %s259 = scalar_select %p258, %s257, 3
        %s260 = smul.addr %s259, 8
        %s261 = scalar_lea.vmem %s3, %s260
        %s262 = smul.u32 2, %s18
        %p263 = scmp.lt.s32.totalorder %s262, 3
        %s264 = scalar_select %p263, %s262, 3
        %s265 = smul.addr %s264, 8
        %s266 = scalar_lea.vmem %s0, %s265
        %s267 = smul.u32 2, %s18
        %s268 = smul.u32 2, %s18
        %p269 = scmp.lt.s32.totalorder %s268, 3
        %s270 = scalar_select %p269, %s268, 3
        %s271 = smul.addr %s270, 8
        %s272 = scalar_lea.vmem %s1, %s271
        %s273 = smul.u32 2, %s18
        %s274 = smul.u32 2, %s18
        %s275 = smul.u32 2, %s18
        %p276 = scmp.lt.s32.totalorder %s275, 3
        %s277 = scalar_select %p276, %s275, 3
        %s278 = smul.addr %s277, 8
        %s279 = scalar_lea.vmem %s3, %s278
        %s280 = smul.u32 2, %s18
        %p281 = scmp.eq.s32.totalorder %s19, 0
        // Predicated region
        $region74: #{tpu_custom_call.1} parent=68 // pred_check
          %p282 = pneg %p281
        $region75: #{tpu_custom_call.1} parent=68 // pred_check_branch
          %284 = sbr.rel (%p282) target = $region77
        $region76: #{tpu_custom_call.1} parent=68 // pred_region
          %vm285 = vcmask 7168
          %286 = vst.msk [vmem:[#allocation2] sm:$0xff] %vm285, 0.0
          %287 = vst.msk [vmem:[#allocation2 + $0x8] sm:$0xff] %vm285, 0.0
          %288 = vst.msk [vmem:[#allocation3] sm:$0xff] %vm285, 0.0
          %289 = vst.msk [vmem:[#allocation3 + $0x8] sm:$0xff] %vm285, 0.0
        $region77: #{tpu_custom_call.1} parent=68 // pred_fallthru
          _
        %v290 = vld [vmem:[%s266] sm:$0xff]
        %v291 = vld [vmem:[%s266 + $0x8] sm:$0xff]
        %v292 = vld [vmem:[%s272] sm:$0xff]
        %v293 = vld [vmem:[%s272 + $0x8] sm:$0xff]
        %s294 = smul.u32 %s19, 128
        %v295 = vlaneseq
        %v296 = vand.u32 %v295, 127
        %v297 = vstv %s294
        %v298 = vadd.s32 %v296, %v297
        %p299 = scmp.lt.s32.totalorder %s294, 96
        // Predicated region
        $region78: #{tpu_custom_call.1} parent=68 // pred_check
          %p300 = pneg %p299
        $region79: #{tpu_custom_call.1} parent=68 // pred_check_branch
          %302 = sbr.rel (%p300) target = $region81
        $region80: #{tpu_custom_call.1} parent=68 // pred_region
          %v303 = vld [vmem:[%s231] sm:$0xf]
          %v304 = vld [vmem:[%s231 + $0x4] sm:$0xf]
          %v305 = vunpack.c.l.bf16 %v303
          %v306 = vunpack.c.l.bf16 %v304
          %307 = vset.pattern.permute.xlu0 0
          %308 = vperm.xlu0 %307, %v290
          %v309 = vpop.permute.xlu0 %308
          %310 = vset.pattern.permute.xlu0 0
          %311 = vperm.xlu0 %310, %v291
          %v312 = vpop.permute.xlu0 %311
          %vm313 = vcmp.eq.s32.totalorder %v298, %v309
          %vm314 = vcmp.eq.s32.totalorder %v298, %v312
          %v315 = vsel %vm313, %v305, 0.0
          %v316 = vsel %vm314, %v306, 0.0
          %v317 = vld [vmem:[#allocation2] sm:$0xff]
          %v318 = vld [vmem:[#allocation2 + $0x8] sm:$0xff]
          %319 = vadd.xlane.f32.xlu0 %v315
          %v320 = vpop.xlane.xlu0 %319
          %321 = vadd.xlane.f32.xlu0 %v316
          %v322 = vpop.xlane.xlu0 %321
          %v323 = vadd.f32 %v317, %v320
          %v324 = vadd.f32 %v318, %v322
          %vm325 = vcmask 7168
          %326 = vst.msk [vmem:[#allocation2] sm:$0xff] %vm325, %v323
          %327 = vst.msk [vmem:[#allocation2 + $0x8] sm:$0xff] %vm325, %v324
        $region81: #{tpu_custom_call.1} parent=68 // pred_fallthru
          _
        %s328 = sadd.s32 %s294, 128
        %p329 = scmp.gt.s32.totalorder %s328, 96
        // Predicated region
        $region82: #{tpu_custom_call.1} parent=68 // pred_check
          %p330 = pneg %p329
        $region83: #{tpu_custom_call.1} parent=68 // pred_check_branch
          %332 = sbr.rel (%p330) target = $region85
        $region84: #{tpu_custom_call.1} parent=68 // pred_region
          %v333 = vld [vmem:[%s231] sm:$0xf]
          %v334 = vld [vmem:[%s231 + $0x4] sm:$0xf]
          %v335 = vunpack.c.l.bf16 %v333
          %v336 = vunpack.c.l.bf16 %v334
          %v337 = vadd.s32 %v292, 96
          %v338 = vadd.s32 %v293, 96
          %339 = vset.pattern.permute.xlu0 0
          %340 = vperm.xlu0 %339, %v337
          %v341 = vpop.permute.xlu0 %340
          %342 = vset.pattern.permute.xlu0 0
          %343 = vperm.xlu0 %342, %v338
          %v344 = vpop.permute.xlu0 %343
          %vm345 = vcmp.eq.s32.totalorder %v298, %v341
          %vm346 = vcmp.eq.s32.totalorder %v298, %v344
          %v347 = vsel %vm345, %v335, 0.0
          %v348 = vsel %vm346, %v336, 0.0
          %v349 = vld [vmem:[#allocation3] sm:$0xff]
          %v350 = vld [vmem:[#allocation3 + $0x8] sm:$0xff]
          %351 = vadd.xlane.f32.xlu0 %v347
          %v352 = vpop.xlane.xlu0 %351
          %353 = vadd.xlane.f32.xlu0 %v348
          %v354 = vpop.xlane.xlu0 %353
          %v355 = vadd.f32 %v349, %v352
          %v356 = vadd.f32 %v350, %v354
          %vm357 = vcmask 7168
          %358 = vst.msk [vmem:[#allocation3] sm:$0xff] %vm357, %v355
          %359 = vst.msk [vmem:[#allocation3 + $0x8] sm:$0xff] %vm357, %v356
        $region85: #{tpu_custom_call.1} parent=68 // pred_fallthru
          _
        %p360 = scmp.eq.s32.totalorder %s19, 1
        // Predicated region
        $region86: #{tpu_custom_call.1} parent=68 // pred_check
          %p361 = pneg %p360
        $region87: #{tpu_custom_call.1} parent=68 // pred_check_branch
          %363 = sbr.rel (%p361) target = $region89
        $region88: #{tpu_custom_call.1} parent=68 // pred_region
          %v364 = vld [vmem:[#allocation2] sm:$0xff]
          %v365 = vld [vmem:[#allocation2 + $0x8] sm:$0xff]
          %vm366 = vcmp.eq.s32.totalorder %v292, 0
          %vm367 = vcmp.eq.s32.totalorder %v293, 0
          %v368 = vld [vmem:[#allocation3] sm:$0xff]
          %v369 = vld [vmem:[#allocation3 + $0x8] sm:$0xff]
          %v370 = vsel %vm366, 0.0, %v368
          %v371 = vsel %vm367, 0.0, %v369
          %v372 = vadd.f32 %v370, 1e-20
          %v373 = vadd.f32 %v371, 1e-20
          %vm374 = vcmp.ne.s32.totalorder %v290, 0
          %vm375 = vcmp.ne.s32.totalorder %v291, 0
          %vm376 = vmor %vm366, %vm374
          %vm377 = vmor %vm367, %vm375
          %v378 = vadd.f32 %v372, %v364
          %v379 = vadd.f32 %v373, %v365
          %v380 = vsel %vm376, %v378, %v372
          %v381 = vsel %vm377, %v379, %v373
          %vm382 = vcmask 7168
          %383 = vst.msk [vmem:[%s279] sm:$0xff] %vm382, %v380
          %384 = vst.msk [vmem:[%s279 + $0x8] sm:$0xff] %vm382, %v381
        $region89: #{tpu_custom_call.1} parent=68 // pred_fallthru
          _
        %s385 = smul.u32 2, %s18
        %p386 = scmp.lt.s32.totalorder %s385, 3
        %s387 = scalar_select %p386, %s385, 3
        %s388 = smul.addr %s387, 8
        %s389 = scalar_lea.vmem %s3, %s388
        // Predicated region
        $region90: #{tpu_custom_call.1} parent=68 // pred_check
          %p390 = pneg %p124
        $region91: #{tpu_custom_call.1} parent=68 // pred_check_branch
          %392 = sbr.rel (%p390) target = $region93
        $region92: #{tpu_custom_call.1} parent=68 // pred_region
          %s393 = smul.u32 2, %s18
        $region93: #{tpu_custom_call.1} parent=68 // pred_fallthru
          _
      $region69: #{tpu_custom_call.1} parent=5 // pred_fallthru
        _
      %p394 = scmp.le.s32.totalorder 2, %s9
      // Predicated region
      $region94: #{tpu_custom_call.1} parent=5 // pred_check
        %p395 = pneg %p394
      $region95: #{tpu_custom_call.1} parent=5 // pred_check_branch
        %397 = sbr.rel (%p395) target = $region97
      $region96: #{tpu_custom_call.1} parent=5 // pred_region
        %s398 = ssub.s32 %s9, 2
        // Predicated region
        $region98: #{tpu_custom_call.1} parent=96 // pred_check
          %p399 = pneg %p130
        $region99: #{tpu_custom_call.1} parent=96 // pred_check_branch
          %401 = sbr.rel (%p399) target = $region101
        $region100: #{tpu_custom_call.1} parent=96 // pred_region
          %s402 = smul.u32 2, %s20
          %p403 = scmp.lt.s32.totalorder %s402, 3
          %s404 = scalar_select %p403, %s402, 3
          %s405 = smul.addr %s404, 8
          %s406 = scalar_lea.vmem %s3, %s405
        $region101: #{tpu_custom_call.1} parent=96 // pred_fallthru
          _
      $region97: #{tpu_custom_call.1} parent=5 // pred_fallthru
        _
    $region6: #{tpu_custom_call.1} parent=1 // loop_footer
      %s13 = sadd.s32 1, %s9
    $region7: #{tpu_custom_call.1} parent=1 // loop_footer_branch
      %8 = sbr.rel target = $region3
    $region8: #{tpu_custom_call.1} parent=1 // loop_exit
      _

</llo_original>
